<compile_context>
chip_gen: v7x
topology: tpu7x:2x2x1
jax: 0.10.0
libtpu: 0.0.40
codegen_flags: <defaults>
</compile_context>

<pallas_src>
import functools

import jax
import jax.numpy as jnp
from jax.experimental import pallas as pl
from jax.experimental.pallas import tpu as pltpu


# ----------------------------------------------------------------------------
# Fused kernel: im2col-conv strip + bias + ReLU + avg-pool accumulate,
# with the Linear(F, E) epilogue on the last HW step.
# Grid: (B, HW // TQ);  HW axis is a reduction ("arbitrary"), batch is parallel.
# ----------------------------------------------------------------------------
def fused_encoder_kernel(p_ref, cw_ref, cb_ref, ew_ref, eb_ref, o_ref,
                         pool_acc, *, inv_hw):
    # p_ref : (1, TQ, Kpad)  bf16   -- im2col patch strip for this image
    # cw_ref: (Kpad, F)      bf16   -- 3x3 conv weight, im2col layout
    # cb_ref: (1, F)         f32    -- conv bias
    # ew_ref: (F, Epad)      bf16   -- embed weight (E padded to 128 lanes)
    # eb_ref: (1, Epad)      f32    -- embed bias (padded)
    # o_ref : (1, 1, Epad)   f32    -- embedded features for this image
    # pool_acc: VMEM (1, F)  f32    -- running sum over H*W
    hw = pl.program_id(1)

    @pl.when(hw == 0)
    def _init():
        pool_acc[...] = jnp.zeros_like(pool_acc)

    # One MXU matmul per strip: (TQ, Kpad) @ (Kpad, F) -> (TQ, F) f32.
    strip = jnp.dot(p_ref[0], cw_ref[...], preferred_element_type=jnp.float32)
    strip = jnp.maximum(strip + cb_ref[...], 0.0)          # bias + ReLU in f32
    pool_acc[...] = pool_acc[...] + jnp.sum(strip, axis=0, keepdims=True)

    @pl.when(hw == pl.num_programs(1) - 1)
    def _finalize():
        pooled = (pool_acc[...] * inv_hw).astype(jnp.bfloat16)      # (1, F)
        emb = jnp.dot(pooled, ew_ref[...],
                      preferred_element_type=jnp.float32)           # (1, Epad)
        o_ref[...] = (emb + eb_ref[...]).reshape(o_ref.shape)


# ----------------------------------------------------------------------------
# EncoderCNN forward
# ----------------------------------------------------------------------------
def encoder_cnn_forward(images_nchw, conv_w, conv_b, embed_w, embed_b):
    # NCHW (PyTorch) -> NHWC so channels/features map to the 128-lane axis.
    x = jnp.transpose(images_nchw, (0, 2, 3, 1)).astype(jnp.float32)
    B, H, W, Cin = x.shape
    F = conv_w.shape[-1]
    E = embed_w.shape[-1]
    HW = H * W

    # --- im2col pre-pass (plain-JAX glue; padding folded in) -----------------
    xp = jnp.pad(x, ((0, 0), (1, 1), (1, 1), (0, 0)))
    cols = [xp[:, ky:ky + H, kx:kx + W, :]
            for ky in range(3) for kx in range(3)]
    patches = jnp.concatenate(cols, axis=-1).reshape(B, HW, 9 * Cin)

    K = 9 * Cin
    Kpad = max(8, ((K + 7) // 8) * 8)                       # 27 -> 32
    patches = jnp.pad(patches, ((0, 0), (0, 0), (0, Kpad - K)))
    patches = patches.astype(jnp.bfloat16)
    w_mat = jnp.pad(conv_w.reshape(K, F), ((0, Kpad - K), (0, 0)))
    w_mat = w_mat.astype(jnp.bfloat16)
    cb = conv_b.reshape(1, F).astype(jnp.float32)

    Epad = ((E + 127) // 128) * 128                          # lane-dense output
    ew = jnp.pad(embed_w, ((0, 0), (0, Epad - E))).astype(jnp.bfloat16)
    eb = jnp.pad(embed_b.reshape(1, E), ((0, 0), (0, Epad - E)))
    eb = eb.astype(jnp.float32)

    # --- HW tiling: bound the live f32 strip to (TQ, F) ----------------------
    TQ = HW
    for cand in (64, 128, 32, 16, 8):
        if HW % cand == 0:
            TQ = cand
            break
    n_hw = HW // TQ

    kernel = functools.partial(fused_encoder_kernel, inv_hw=1.0 / HW)

    out_pad = pl.pallas_call(
        kernel,
        out_shape=jax.ShapeDtypeStruct((B, 1, Epad), jnp.float32),
        grid=(B, n_hw),
        in_specs=[
            pl.BlockSpec((1, TQ, Kpad), lambda bi, hi: (bi, hi, 0)),
            pl.BlockSpec((Kpad, F), lambda bi, hi: (0, 0)),
            pl.BlockSpec((1, F), lambda bi, hi: (0, 0)),
            pl.BlockSpec((F, Epad), lambda bi, hi: (0, 0)),
            pl.BlockSpec((1, Epad), lambda bi, hi: (0, 0)),
        ],
        out_specs=pl.BlockSpec((1, 1, Epad), lambda bi, hi: (bi, 0, 0)),
        scratch_shapes=[pltpu.VMEM((1, F), jnp.float32)],
        compiler_params=pltpu.CompilerParams(
            dimension_semantics=("parallel", "arbitrary")),
    )(patches, w_mat, cb, ew, eb)

    return out_pad[:, 0, :E]                                 # (B, embed_size)


# ----------------------------------------------------------------------------
# References for correctness checks.
# ----------------------------------------------------------------------------
def reference_matched(images_nchw, conv_w, conv_b, embed_w, embed_b):
    """Same math path as the kernel: bf16 MXU operands, f32 accumulate."""
    x = jnp.transpose(images_nchw, (0, 2, 3, 1)).astype(jnp.float32)
    B, H, W, Cin = x.shape
    F = conv_w.shape[-1]
    xp = jnp.pad(x, ((0, 0), (1, 1), (1, 1), (0, 0)))
    cols = [xp[:, ky:ky + H, kx:kx + W, :]
            for ky in range(3) for kx in range(3)]
    patches = jnp.concatenate(cols, axis=-1).reshape(B, H * W, 9 * Cin)
    patches = patches.astype(jnp.bfloat16)
    w_mat = conv_w.reshape(9 * Cin, F).astype(jnp.bfloat16)
    feats = jnp.einsum("bqk,kf->bqf", patches, w_mat,
                       preferred_element_type=jnp.float32)
    feats = jnp.maximum(feats + conv_b.reshape(1, 1, F), 0.0)
    pooled = feats.mean(axis=1).astype(jnp.bfloat16)
    emb = jnp.dot(pooled, embed_w.astype(jnp.bfloat16),
                  preferred_element_type=jnp.float32)
    return emb + embed_b.reshape(1, -1)


def reference_f32(images_nchw, conv_w, conv_b, embed_w, embed_b):
    """Pure f32 reference (HIGHEST precision) with identical semantics."""
    x = jnp.transpose(images_nchw, (0, 2, 3, 1)).astype(jnp.float32)
    B, H, W, Cin = x.shape
    F = conv_w.shape[-1]
    xp = jnp.pad(x, ((0, 0), (1, 1), (1, 1), (0, 0)))
    acc = jnp.zeros((B, H, W, F), jnp.float32)
    for ky in range(3):
        for kx in range(3):
            acc = acc + jnp.einsum("bhwc,cf->bhwf",
                                   xp[:, ky:ky + H, kx:kx + W, :],
                                   conv_w[ky, kx],
                                   precision=jax.lax.Precision.HIGHEST)
    feats = jnp.maximum(acc + conv_b.reshape(1, 1, 1, F), 0.0)
    pooled = feats.mean(axis=(1, 2))
    return (jnp.dot(pooled, embed_w, precision=jax.lax.Precision.HIGHEST)
            + embed_b.reshape(1, -1))


if __name__ == "__main__":
    key = jax.random.PRNGKey(0)
    k1, k2, k3, k4, k5 = jax.random.split(key, 5)

    # Small synthetic shapes consistent with the module's forward.
    B, C, H, W = 2, 3, 16, 16     # images: NCHW like PyTorch
    F = 256                       # stand-in for resnet.fc.in_features (2048)
    E = 32                        # embed_size

    images = jax.random.normal(k1, (B, C, H, W), jnp.float32)
    conv_w = jax.random.normal(k2, (3, 3, C, F), jnp.float32) * 0.1
    conv_b = jax.random.normal(k3, (F,), jnp.float32) * 0.1
    embed_w = jax.random.normal(k4, (F, E), jnp.float32) * 0.05
    embed_b = jax.random.normal(k5, (E,), jnp.float32) * 0.05

    fwd = jax.jit(encoder_cnn_forward)
    out = fwd(images, conv_w, conv_b, embed_w, embed_b)
    out = jax.block_until_ready(out)
    assert out.shape == (B, E)

    ref_m = reference_matched(images, conv_w, conv_b, embed_w, embed_b)
    ref_f = reference_f32(images, conv_w, conv_b, embed_w, embed_b)
    assert bool(jnp.allclose(out, ref_m, atol=5e-3, rtol=5e-3)), \
        "mismatch vs matched-precision (bf16 MXU) reference"
    assert bool(jnp.allclose(out, ref_f, atol=3e-2, rtol=3e-2)), \
        "mismatch vs pure-f32 reference"

    print("KERNEL_OK")
</pallas_src>

<mosaic_0001>
module attributes {stable_mosaic.version = 11 : i64} {
  func.func @fused_encoder_kernel(%arg0: i32, %arg1: i32, %arg2: memref<1x64x32xbf16, #tpu.memory_space<vmem>>, %arg3: memref<32x256xbf16, #tpu.memory_space<vmem>>, %arg4: memref<1x256xf32, #tpu.memory_space<vmem>>, %arg5: memref<256x128xbf16, #tpu.memory_space<vmem>>, %arg6: memref<1x128xf32, #tpu.memory_space<vmem>>, %arg7: memref<1x1x128xf32, #tpu.memory_space<vmem>>, %arg8: memref<1x256xf32, #tpu.memory_space<vmem>>) attributes {dimension_semantics = [#tpu.dimension_semantics<parallel>, #tpu.dimension_semantics<arbitrary>], iteration_bounds = array<i64: 2, 4>, scalar_prefetch = 0 : i64, scratch_operands = 1 : i64, tpu.core_type = #tpu.core_type<tc>, window_params = [{transform_indices = @transform_0, window_bounds = array<i64: 1, 64, 32>}, {pipeline_mode = #tpu.pipeline_mode<synchronous>, transform_indices = @transform_1, window_bounds = array<i64: 32, 256>}, {pipeline_mode = #tpu.pipeline_mode<synchronous>, transform_indices = @transform_2, window_bounds = array<i64: 1, 256>}, {pipeline_mode = #tpu.pipeline_mode<synchronous>, transform_indices = @transform_3, window_bounds = array<i64: 256, 128>}, {pipeline_mode = #tpu.pipeline_mode<synchronous>, transform_indices = @transform_4, window_bounds = array<i64: 1, 128>}, {transform_indices = @transform_5, window_bounds = array<i64: 1, 1, 128>}]} {
    %c0_i32 = arith.constant 0 : i32
    %0 = arith.cmpi eq, %arg1, %c0_i32 : i32
    %1 = arith.extui %0 : i1 to i32
    %c0_i32_0 = arith.constant 0 : i32
    %2 = arith.cmpi ne, %1, %c0_i32_0 : i32
    scf.if %2 {
      %cst_14 = arith.constant 0.000000e+00 : f32
      %20 = vector.broadcast %cst_14 : f32 to vector<1x256xf32>
      %c0_15 = arith.constant 0 : index
      %c0_16 = arith.constant 0 : index
      %21 = vector.load %arg8[%c0_15, %c0_16] : memref<1x256xf32, #tpu.memory_space<vmem>>, vector<1x256xf32>
      tpu.vector_store %arg8[%c0_15, %c0_16], %20 {strides = array<i32>} : memref<1x256xf32, #tpu.memory_space<vmem>>, vector<1x256xf32>,
    } else {
    }
    %c0 = arith.constant 0 : index
    %c0_1 = arith.constant 0 : index
    %c0_2 = arith.constant 0 : index
    %3 = vector.load %arg2[%c0, %c0_1, %c0_2] : memref<1x64x32xbf16, #tpu.memory_space<vmem>>, vector<1x64x32xbf16>
    %4 = vector.shape_cast %3 : vector<1x64x32xbf16> to vector<64x32xbf16>
    %c0_3 = arith.constant 0 : index
    %c0_4 = arith.constant 0 : index
    %5 = vector.load %arg3[%c0_3, %c0_4] : memref<32x256xbf16, #tpu.memory_space<vmem>>, vector<32x256xbf16>
    %cst = arith.constant dense<0.000000e+00> : vector<64x256xf32>
    %6 = tpu.matmul %4, %5, %cst {dimension_numbers = #tpu.dot_dimension_numbers<[1], [0], [0], [1], [0, 0, 1, 1], [], []>} : vector<64x32xbf16>, vector<32x256xbf16>, vector<64x256xf32> -> vector<64x256xf32>
    %c0_5 = arith.constant 0 : index
    %c0_6 = arith.constant 0 : index
    %7 = vector.load %arg4[%c0_5, %c0_6] : memref<1x256xf32, #tpu.memory_space<vmem>>, vector<1x256xf32>
    %8 = vector.broadcast %7 : vector<1x256xf32> to vector<64x256xf32>
    %9 = arith.addf %6, %8 : vector<64x256xf32>
    %cst_7 = arith.constant 0.000000e+00 : f32
    %10 = vector.broadcast %cst_7 : f32 to vector<64x256xf32>
    %11 = arith.maximumf %9, %10 : vector<64x256xf32>
    %c0_8 = arith.constant 0 : index
    %c0_9 = arith.constant 0 : index
    %12 = vector.load %arg8[%c0_8, %c0_9] : memref<1x256xf32, #tpu.memory_space<vmem>>, vector<1x256xf32>
    %cst_10 = arith.constant dense<0.000000e+00> : vector<256xf32>
    %13 = vector.multi_reduction <add>, %11, %cst_10 [0] : vector<64x256xf32> to vector<256xf32>
    %14 = vector.shape_cast %13 : vector<256xf32> to vector<1x256xf32>
    %15 = arith.addf %12, %14 : vector<1x256xf32>
    %c0_11 = arith.constant 0 : index
    %c0_12 = arith.constant 0 : index
    %16 = vector.load %arg8[%c0_11, %c0_12] : memref<1x256xf32, #tpu.memory_space<vmem>>, vector<1x256xf32>
    tpu.vector_store %arg8[%c0_11, %c0_12], %15 {strides = array<i32>} : memref<1x256xf32, #tpu.memory_space<vmem>>, vector<1x256xf32>,
    %c3_i32 = arith.constant 3 : i32
    %17 = arith.cmpi eq, %arg1, %c3_i32 : i32
    %18 = arith.extui %17 : i1 to i32
    %c0_i32_13 = arith.constant 0 : i32
    %19 = arith.cmpi ne, %18, %c0_i32_13 : i32
    scf.if %19 {
      %c0_14 = arith.constant 0 : index
      %c0_15 = arith.constant 0 : index
      %20 = vector.load %arg8[%c0_14, %c0_15] : memref<1x256xf32, #tpu.memory_space<vmem>>, vector<1x256xf32>
      %cst_16 = arith.constant 3.906250e-03 : f32
      %21 = vector.broadcast %cst_16 : f32 to vector<1x256xf32>
      %22 = arith.mulf %20, %21 : vector<1x256xf32>
      %23 = arith.truncf %22 : vector<1x256xf32> to vector<1x256xbf16>
      %c0_17 = arith.constant 0 : index
      %c0_18 = arith.constant 0 : index
      %24 = vector.load %arg5[%c0_17, %c0_18] : memref<256x128xbf16, #tpu.memory_space<vmem>>, vector<256x128xbf16>
      %cst_19 = arith.constant dense<0.000000e+00> : vector<1x128xf32>
      %25 = tpu.matmul %23, %24, %cst_19 {dimension_numbers = #tpu.dot_dimension_numbers<[1], [0], [0], [1], [0, 0, 1, 1], [], []>} : vector<1x256xbf16>, vector<256x128xbf16>, vector<1x128xf32> -> vector<1x128xf32>
      %c0_20 = arith.constant 0 : index
      %c0_21 = arith.constant 0 : index
      %26 = vector.load %arg6[%c0_20, %c0_21] : memref<1x128xf32, #tpu.memory_space<vmem>>, vector<1x128xf32>
      %27 = arith.addf %25, %26 : vector<1x128xf32>
      %28 = vector.shape_cast %27 : vector<1x128xf32> to vector<1x1x128xf32>
      %c0_22 = arith.constant 0 : index
      %c0_23 = arith.constant 0 : index
      %c0_24 = arith.constant 0 : index
      %29 = vector.load %arg7[%c0_22, %c0_23, %c0_24] : memref<1x1x128xf32, #tpu.memory_space<vmem>>, vector<1x1x128xf32>
      tpu.vector_store %arg7[%c0_22, %c0_23, %c0_24], %28 {strides = array<i32>} : memref<1x1x128xf32, #tpu.memory_space<vmem>>, vector<1x1x128xf32>,
    } else {
    }
    return
  }
  func.func @transform_0(%arg0: i32, %arg1: i32) -> (i32, i32, i32) {
    %c0_i32 = arith.constant 0 : i32
    %c0_i32_0 = arith.constant 0 : i32
    return %arg0, %arg1, %c0_i32 : i32, i32, i32
  }
  func.func @transform_1(%arg0: i32, %arg1: i32) -> (i32, i32) {
    %c0_i32 = arith.constant 0 : i32
    %c0_i32_0 = arith.constant 0 : i32
    %c0_i32_1 = arith.constant 0 : i32
    return %c0_i32, %c0_i32_0 : i32, i32
  }
  func.func @transform_2(%arg0: i32, %arg1: i32) -> (i32, i32) {
    %c0_i32 = arith.constant 0 : i32
    %c0_i32_0 = arith.constant 0 : i32
    %c0_i32_1 = arith.constant 0 : i32
    return %c0_i32, %c0_i32_0 : i32, i32
  }
  func.func @transform_3(%arg0: i32, %arg1: i32) -> (i32, i32) {
    %c0_i32 = arith.constant 0 : i32
    %c0_i32_0 = arith.constant 0 : i32
    %c0_i32_1 = arith.constant 0 : i32
    return %c0_i32, %c0_i32_0 : i32, i32
  }
  func.func @transform_4(%arg0: i32, %arg1: i32) -> (i32, i32) {
    %c0_i32 = arith.constant 0 : i32
    %c0_i32_0 = arith.constant 0 : i32
    %c0_i32_1 = arith.constant 0 : i32
    return %c0_i32, %c0_i32_0 : i32, i32
  }
  func.func @transform_5(%arg0: i32, %arg1: i32) -> (i32, i32, i32) {
    %c0_i32 = arith.constant 0 : i32
    %c0_i32_0 = arith.constant 0 : i32
    %c0_i32_1 = arith.constant 0 : i32
    return %arg0, %c0_i32, %c0_i32_0 : i32, i32, i32
  }
}

</mosaic_0001>

<llo_original>
// kernel: encoder_cnn_forward.1
$region0: #{encoder_cnn_forward.1}
  #allocation0 [shape = 'u32[]', space=smem, size = 0x4, offset = 0x4, fixed_abs, tag = 'smem constant byte address 0x4 - core index']
  #allocation1 [shape = 'u32[144,128]{1,0:T(1,128)}', space=vmem, size = 0x12000, scoped, tag = 'internal scratch']
  #allocation2 [shape = 'f32[1,256]{1,0:T(1,128)}', space=vmem, size = 0x400, scoped, tag = 'scratch operand']
  %s0 = inlined_call_operand.vmem [shape: bf16[2,256,32], index: 0, kind: input, shape index: {}]
  %s1 = inlined_call_operand.vmem [shape: bf16[32,256], index: 1, kind: input, shape index: {}]
  %s2 = inlined_call_operand.vmem [shape: f32[1,256], index: 2, kind: input, shape index: {}]
  %s3 = inlined_call_operand.vmem [shape: bf16[256,128], index: 3, kind: input, shape index: {}]
  %s4 = inlined_call_operand.vmem [shape: f32[1,128], index: 4, kind: input, shape index: {}]
  %s5 = inlined_call_operand.hbm [shape: f32[2,1,128], index: 5, kind: output, shape index: {}]
  %s6 = sld [smem:[#allocation0]]
  $region61: #{encoder_cnn_forward.1} parent=0
    _
  %s8 = ssub.s32 1, %s6
  %s9 = scalar_select 0, %s8, %s6
  $region1: #{encoder_cnn_forward.1} parent=0
    #allocation3 [shape = 'u8[1024]{0}', space=vmem, size = 0x400, scoped, tag = 'output window, operand 0']
    #allocation4 [shape = 's32[2]{0}', space=sflag, size = 0x8, scoped, tag = 'scoped memory for encoder_cnn_forward.1']
    %10 = vsyncpa [#allocation4], 0
    %s11 = scalar_lea.sflag [#allocation4], 1
    %12 = vsyncpa %s11, 0
    loop: start=0, step=1, limit=10
    $region2: #{encoder_cnn_forward.1} parent=1 // loop_pre_header
      _
    $region3: #{encoder_cnn_forward.1} parent=1 // loop_header
      %s14 = sphi 0, %s18
      %p15 = scmp.ge.s32.totalorder %s14, 10
      %s21 = sphi 0, %s33
      %s22 = sphi 0, %s29
      %s23 = sphi 0, %s21
      %s24 = sphi 0, %s22
      %s25 = sphi 0, %s23
      %s26 = sphi 0, %s24
      %s38 = sphi 0, %s40
      %s41 = sphi 0, %s38
      %s42 = sphi 0, %s41
      %s58 = sphi 0, %s42
      %s62 = sphi 0, %s62
      %s64 = sphi 0, %s62
      %s65 = sphi 0, %s64
      %s79 = sphi 0, %s65
      %s83 = sphi 0, %s83
      %s85 = sphi 0, %s83
      %s86 = sphi 0, %s85
      %s100 = sphi 0, %s86
      %s104 = sphi 0, %s104
      %s106 = sphi 0, %s104
      %s107 = sphi 0, %s106
      %s121 = sphi 0, %s107
      %s125 = sphi 0, %s125
      %s127 = sphi 0, %s125
      %s128 = sphi 0, %s127
      %s142 = sphi 0, %s128
      %s148 = sphi 0, %s150
      %s151 = sphi 0, %s148
      %s152 = sphi 0, %s151
      %s168 = sphi 0, %s152
    $region4: #{encoder_cnn_forward.1} parent=1 // loop_header_branch
      %17 = sbr.rel (%p15) target = $region8
    $region5: #{encoder_cnn_forward.1} parent=1 // loop_body
      %s19 = ssub.s32 %s14, 1
      %s20 = ssub.s32 %s14, 2
      %s27 = sadd.s32 1, %s22
      %p28 = scmp.ge.s32.totalorder %s27, 4
      %s29 = scalar_select %p28, 0, %s27
      %s30 = sadd.s32 1, %s21
      %s31 = scalar_select %p28, %s30, %s21
      %p32 = scmp.ge.s32.totalorder %s31, 2
      %s33 = scalar_select %p32, 0, %s31
      %s34 = ssub.s32 %s21, %s33
      %s35 = ssub.s32 %s22, %s29
      %s36 = sor.u32 %s34, %s35
      %p37 = scmp.eq.s32.totalorder %s36, 0
      %s39 = sadd.s32 %s38, 1
      %s40 = scalar_select %p37, %s38, %s39
      %p43 = pneg %p37
      %p44 = scmp.eq.s32.totalorder %s14, 7
      %p45 = por %p43, %p44
      %p46 = scmp.ne.s32.totalorder %s38, %s41
      %p47 = scmp.eq.s32.totalorder %s14, 0
      %p48 = por %p46, %p47
      %p49 = scmp.ne.s32.totalorder %s38, %s41
      %p50 = scmp.eq.s32.totalorder %s19, 7
      %p51 = por %p49, %p50
      %p52 = scmp.ne.s32.totalorder %s41, %s42
      %p53 = scmp.eq.s32.totalorder %s19, 0
      %p54 = por %p52, %p53
      %p55 = scmp.ne.s32.totalorder %s41, %s42
      %p56 = scmp.eq.s32.totalorder %s20, 7
      %p57 = por %p55, %p56
      %p59 = scmp.ne.s32.totalorder %s42, %s58
      %p60 = scmp.eq.s32.totalorder %s20, 0
      %p61 = por %p59, %p60
      %s63 = sadd.s32 %s62, 1
      %p66 = scmp.eq.s32.totalorder %s14, 7
      %p67 = scmp.ne.s32.totalorder %s62, %s64
      %p68 = scmp.eq.s32.totalorder %s14, 0
      %p69 = por %p67, %p68
      %p70 = scmp.ne.s32.totalorder %s62, %s64
      %p71 = scmp.eq.s32.totalorder %s19, 7
      %p72 = por %p70, %p71
      %p73 = scmp.ne.s32.totalorder %s64, %s65
      %p74 = scmp.eq.s32.totalorder %s19, 0
      %p75 = por %p73, %p74
      %p76 = scmp.ne.s32.totalorder %s64, %s65
      %p77 = scmp.eq.s32.totalorder %s20, 7
      %p78 = por %p76, %p77
      %p80 = scmp.ne.s32.totalorder %s65, %s79
      %p81 = scmp.eq.s32.totalorder %s20, 0
      %p82 = por %p80, %p81
      %s84 = sadd.s32 %s83, 1
      %p87 = scmp.eq.s32.totalorder %s14, 7
      %p88 = scmp.ne.s32.totalorder %s83, %s85
      %p89 = scmp.eq.s32.totalorder %s14, 0
      %p90 = por %p88, %p89
      %p91 = scmp.ne.s32.totalorder %s83, %s85
      %p92 = scmp.eq.s32.totalorder %s19, 7
      %p93 = por %p91, %p92
      %p94 = scmp.ne.s32.totalorder %s85, %s86
      %p95 = scmp.eq.s32.totalorder %s19, 0
      %p96 = por %p94, %p95
      %p97 = scmp.ne.s32.totalorder %s85, %s86
      %p98 = scmp.eq.s32.totalorder %s20, 7
      %p99 = por %p97, %p98
      %p101 = scmp.ne.s32.totalorder %s86, %s100
      %p102 = scmp.eq.s32.totalorder %s20, 0
      %p103 = por %p101, %p102
      %s105 = sadd.s32 %s104, 1
      %p108 = scmp.eq.s32.totalorder %s14, 7
      %p109 = scmp.ne.s32.totalorder %s104, %s106
      %p110 = scmp.eq.s32.totalorder %s14, 0
      %p111 = por %p109, %p110
      %p112 = scmp.ne.s32.totalorder %s104, %s106
      %p113 = scmp.eq.s32.totalorder %s19, 7
      %p114 = por %p112, %p113
      %p115 = scmp.ne.s32.totalorder %s106, %s107
      %p116 = scmp.eq.s32.totalorder %s19, 0
      %p117 = por %p115, %p116
      %p118 = scmp.ne.s32.totalorder %s106, %s107
      %p119 = scmp.eq.s32.totalorder %s20, 7
      %p120 = por %p118, %p119
      %p122 = scmp.ne.s32.totalorder %s107, %s121
      %p123 = scmp.eq.s32.totalorder %s20, 0
      %p124 = por %p122, %p123
      %s126 = sadd.s32 %s125, 1
      %p129 = scmp.eq.s32.totalorder %s14, 7
      %p130 = scmp.ne.s32.totalorder %s125, %s127
      %p131 = scmp.eq.s32.totalorder %s14, 0
      %p132 = por %p130, %p131
      %p133 = scmp.ne.s32.totalorder %s125, %s127
      %p134 = scmp.eq.s32.totalorder %s19, 7
      %p135 = por %p133, %p134
      %p136 = scmp.ne.s32.totalorder %s127, %s128
      %p137 = scmp.eq.s32.totalorder %s19, 0
      %p138 = por %p136, %p137
      %p139 = scmp.ne.s32.totalorder %s127, %s128
      %p140 = scmp.eq.s32.totalorder %s20, 7
      %p141 = por %p139, %p140
      %p143 = scmp.ne.s32.totalorder %s128, %s142
      %p144 = scmp.eq.s32.totalorder %s20, 0
      %p145 = por %p143, %p144
      %s146 = ssub.s32 %s21, %s33
      %p147 = scmp.eq.s32.totalorder %s146, 0
      %s149 = sadd.s32 %s148, 1
      %s150 = scalar_select %p147, %s148, %s149
      %p153 = pneg %p147
      %p154 = scmp.eq.s32.totalorder %s14, 7
      %p155 = por %p153, %p154
      %p156 = scmp.ne.s32.totalorder %s148, %s151
      %p157 = scmp.eq.s32.totalorder %s14, 0
      %p158 = por %p156, %p157
      %p159 = scmp.ne.s32.totalorder %s148, %s151
      %p160 = scmp.eq.s32.totalorder %s19, 7
      %p161 = por %p159, %p160
      %p162 = scmp.ne.s32.totalorder %s151, %s152
      %p163 = scmp.eq.s32.totalorder %s19, 0
      %p164 = por %p162, %p163
      %p165 = scmp.ne.s32.totalorder %s151, %s152
      %p166 = scmp.eq.s32.totalorder %s20, 7
      %p167 = por %p165, %p166
      %p169 = scmp.ne.s32.totalorder %s152, %s168
      %p170 = scmp.eq.s32.totalorder %s20, 0
      %p171 = por %p169, %p170
      %p172 = scmp.le.s32.totalorder 1, %s14
      %p173 = scmp.lt.s32.totalorder %s14, 9
      %p174 = pnand %p172, %p173
      %p175 = pneg %p174
      // Predicated region
      $region9: #{encoder_cnn_forward.1} parent=5 // pred_check
        _
      $region10: #{encoder_cnn_forward.1} parent=5 // pred_check_branch
        %177 = sbr.rel (%p174) target = $region12
      $region11: #{encoder_cnn_forward.1} parent=5 // pred_region
        %s178 = ssub.s32 %s14, 1
        // Predicated region
        $region13: #{encoder_cnn_forward.1} parent=11 // pred_check
          %p179 = pneg %p75
        $region14: #{encoder_cnn_forward.1} parent=11 // pred_check_branch
          %181 = sbr.rel (%p179) target = $region16
        $region15: #{encoder_cnn_forward.1} parent=11 // pred_region
          _
        $region16: #{encoder_cnn_forward.1} parent=11 // pred_fallthru
          _
        // Predicated region
        $region17: #{encoder_cnn_forward.1} parent=11 // pred_check
          %p182 = pneg %p96
        $region18: #{encoder_cnn_forward.1} parent=11 // pred_check_branch
          %184 = sbr.rel (%p182) target = $region20
        $region19: #{encoder_cnn_forward.1} parent=11 // pred_region
          _
        $region20: #{encoder_cnn_forward.1} parent=11 // pred_fallthru
          _
        // Predicated region
        $region21: #{encoder_cnn_forward.1} parent=11 // pred_check
          %p185 = pneg %p117
        $region22: #{encoder_cnn_forward.1} parent=11 // pred_check_branch
          %187 = sbr.rel (%p185) target = $region24
        $region23: #{encoder_cnn_forward.1} parent=11 // pred_region
          _
        $region24: #{encoder_cnn_forward.1} parent=11 // pred_fallthru
          _
        // Predicated region
        $region25: #{encoder_cnn_forward.1} parent=11 // pred_check
          %p188 = pneg %p138
        $region26: #{encoder_cnn_forward.1} parent=11 // pred_check_branch
          %190 = sbr.rel (%p188) target = $region28
        $region27: #{encoder_cnn_forward.1} parent=11 // pred_region
          _
        $region28: #{encoder_cnn_forward.1} parent=11 // pred_fallthru
          _
      $region12: #{encoder_cnn_forward.1} parent=5 // pred_fallthru
        _
      %p191 = scmp.lt.s32.totalorder %s14, 8
      // Predicated region
      $region29: #{encoder_cnn_forward.1} parent=5 // pred_check
        %p192 = pneg %p191
      $region30: #{encoder_cnn_forward.1} parent=5 // pred_check_branch
        %194 = sbr.rel (%p192) target = $region32
      $region31: #{encoder_cnn_forward.1} parent=5 // pred_region
        // Predicated region
        $region33: #{encoder_cnn_forward.1} parent=31 // pred_check
          %p195 = pneg %p48
        $region34: #{encoder_cnn_forward.1} parent=31 // pred_check_branch
          %197 = sbr.rel (%p195) target = $region36
        $region35: #{encoder_cnn_forward.1} parent=31 // pred_region
          %s198 = smul.u32 8, %s22
          %p199 = scmp.lt.s32.totalorder %s21, 1
          %s200 = scalar_select %p199, %s21, 1
          %p201 = scmp.lt.s32.totalorder %s198, 31
          %s202 = scalar_select %p201, %s198, 31
          %s203 = smul.addr %s200, 32
          %s204 = sadd.s32 %s202, %s203
          %s205 = smul.addr %s204, 4
          %s206 = scalar_lea.vmem %s0, %s205
          %s207 = smul.u32 8, %s22
        $region36: #{encoder_cnn_forward.1} parent=31 // pred_fallthru
          _
      $region32: #{encoder_cnn_forward.1} parent=5 // pred_fallthru
        _
      %p208 = scmp.le.s32.totalorder 1, %s14
      %p209 = scmp.lt.s32.totalorder %s14, 9
      %p210 = pnand %p208, %p209
      %p211 = pneg %p210
      // Predicated region
      $region37: #{encoder_cnn_forward.1} parent=5 // pred_check
        _
      $region38: #{encoder_cnn_forward.1} parent=5 // pred_check_branch
        %213 = sbr.rel (%p210) target = $region40
      $region39: #{encoder_cnn_forward.1} parent=5 // pred_region
        %s214 = ssub.s32 %s14, 1
        %s215 = smul.u32 8, %s24
        %p216 = scmp.lt.s32.totalorder %s23, 1
        %s217 = scalar_select %p216, %s23, 1
        %p218 = scmp.lt.s32.totalorder %s215, 31
        %s219 = scalar_select %p218, %s215, 31
        %s220 = smul.addr %s217, 32
        %s221 = sadd.s32 %s219, %s220
        %s222 = smul.addr %s221, 4
        %s223 = scalar_lea.vmem %s0, %s222
        %p224 = pneg %p54
        %p225 = pneg %p51
        %p226 = pneg %p75
        %p227 = pneg %p72
        %p228 = pneg %p96
        %p229 = pneg %p93
        %p230 = pneg %p117
        %p231 = pneg %p114
        %p232 = pneg %p138
        %p233 = pneg %p135
        %p234 = pneg %p164
        %p235 = pneg %p161
        %s236 = sand.u32 %s151, 1
        %s237 = scalar_lea.sflag [#allocation4], %s236
        %s238 = sand.u32 %s151, 1
        %s239 = scalar_lea.vmem [#allocation3], %s238
        %s240 = smul.u32 8, %s24
        %p241 = scmp.lt.s32.totalorder %s23, 1
        %s242 = scalar_select %p241, %s23, 1
        %p243 = scmp.lt.s32.totalorder %s240, 31
        %s244 = scalar_select %p243, %s240, 31
        %s245 = smul.addr %s242, 32
        %s246 = sadd.s32 %s244, %s245
        %s247 = smul.addr %s246, 4
        %s248 = scalar_lea.vmem %s0, %s247
        %s249 = smul.u32 8, %s24
        %p251 = scmp.eq.s32.totalorder %s24, 0
        // Predicated region
        $region41: #{encoder_cnn_forward.1} parent=39 // pred_check
          %p252 = pneg %p251
        $region42: #{encoder_cnn_forward.1} parent=39 // pred_check_branch
          %254 = sbr.rel (%p252) target = $region44
        $region43: #{encoder_cnn_forward.1} parent=39 // pred_region
          %v255 = vlaneseq
          %vm256 = vcmp.ge.s32.totalorder %v255, 0
          %vm257 = vcmp.lt.s32.totalorder %v255, 256
          %vm258 = vmand %vm256, %vm257
          %259 = vst.msk [vmem:[#allocation2] sm:$0x3] %vm258, 0.0
        $region44: #{encoder_cnn_forward.1} parent=39 // pred_fallthru
          _
        %v260 = vld [vmem:[%s248] sm:$0xf]
        %v261 = vld [vmem:[%s248 + $0x4] sm:$0xf]
        %v262 = vld [vmem:[%s248 + $0x8] sm:$0xf]
        %v263 = vld [vmem:[%s248 + $0xc] sm:$0xf]
        %v264 = vld [vmem:[%s248 + $0x10] sm:$0xf]
        %v265 = vld [vmem:[%s248 + $0x14] sm:$0xf]
        %v266 = vld [vmem:[%s248 + $0x18] sm:$0xf]
        %v267 = vld [vmem:[%s248 + $0x1c] sm:$0xf]
        %v268 = vld [vmem:[%s1] sm:$0xff]
        %v269 = vld [vmem:[%s1 + $0x8] sm:$0xff]
        %v270 = vld [vmem:[%s1 + $0x10] sm:$0xff]
        %v271 = vld [vmem:[%s1 + $0x18] sm:$0xff]
        %v272 = vld [vmem:[%s2] sm:$0x3]
        %v274 = vlaneseq
        %v275 = vshrl.u32 %v274, 7
        %v276 = vsub.s32 0, %v275
        %v277 = vrot.slane %v272, %v276
        %v278 = vlaneseq
        %v279 = vshrl.u32 %v278, 7
        %v280 = vsub.s32 1, %v279
        %v281 = vrot.slane %v272, %v280
        %v292 = vunpack.c.l.b16 %v260
        %v293 = vunpack.c.l.b16 %v261
        %v294 = vunpack.c.l.b16 %v262
        %v295 = vunpack.c.l.b16 %v263
        %v296 = vunpack.c.l.b16 %v264
        %v297 = vunpack.c.l.b16 %v265
        %v298 = vunpack.c.l.b16 %v266
        %v299 = vunpack.c.l.b16 %v267
        %v300 = vpack.c.b16 %v293, %v292
        %v301 = vpack.c.b16 %v295, %v294
        %v302 = vpack.c.b16 %v297, %v296
        %v303 = vpack.c.b16 %v299, %v298
        %v308 = vunpack.c.l.b16 %v268
        %v309 = vunpack.c.h.b16 %v268
        %v310 = vunpack.c.l.b16 %v269
        %v311 = vunpack.c.h.b16 %v269
        %v312 = vunpack.c.l.b16 %v270
        %v313 = vunpack.c.h.b16 %v270
        %v314 = vunpack.c.l.b16 %v271
        %v315 = vunpack.c.h.b16 %v271
        %v316 = vpack.c.b16 %v310, %v308
        %v317 = vpack.c.b16 %v311, %v309
        %v318 = vpack.c.b16 %v314, %v312
        %v319 = vpack.c.b16 %v315, %v313
        %vm324 = vcmask 261120
        %v326 = vsel %vm324, %v300, 0
        %v329 = vsel %vm324, %v301, 0
        %v332 = vsel %vm324, %v302, 0
        %v335 = vsel %vm324, %v303, 0
        %337 = vmatprep.subr.bf16.mxu0 %v317
        %338 = vmatpush1.bf16.msra.mxu0 %v316
        %339 = vmatprep.subr.bf16.mxu0 %v319
        %340 = vmatpush1.bf16.msra.mxu0 %v318
        %341 = vmatprep.subr.bf16.mxu0 0
        %342 = vmatpush1.bf16.msra.mxu0 0
        %343 = vmatprep.subr.bf16.mxu0 0
        %344 = vmatpush1.bf16.msra.mxu0 0
        %345 = vmatprep.subr.bf16.mxu0 0
        %346 = vmatpush1.bf16.msra.mxu0 0
        %347 = vmatprep.subr.bf16.mxu0 0
        %348 = vmatpush1.bf16.msra.mxu0 0
        %349 = vmatprep.subr.bf16.mxu0 0
        %350 = vmatpush1.bf16.msra.mxu0 0
        %351 = vmatprep.subr.bf16.mxu0 0
        %352 = vmatpush1.bf16.msra.mxu0 0
        %353 = vmatprep.subr.bf16.mxu0 0
        %354 = vmatpush1.bf16.msra.mxu0 0
        %355 = vmatprep.subr.bf16.mxu0 0
        %356 = vmatpush1.bf16.msra.mxu0 0
        %357 = vmatprep.subr.bf16.mxu0 0
        %358 = vmatpush1.bf16.msra.mxu0 0
        %359 = vmatprep.subr.bf16.mxu0 0
        %360 = vmatpush1.bf16.msra.mxu0 0
        %361 = vmatprep.subr.bf16.mxu0 0
        %362 = vmatpush1.bf16.msra.mxu0 0
        %363 = vmatprep.subr.bf16.mxu0 0
        %364 = vmatpush1.bf16.msra.mxu0 0
        %365 = vmatprep.subr.bf16.mxu0 0
        %366 = vmatpush1.bf16.msra.mxu0 0
        %367 = vmatprep.subr.bf16.mxu0 0
        %368 = vmatpush1.bf16.msra.mxu0 0
        %369 = vmatprep.mubr.bf16.mxu0 0
        %370 = vmatmul.mubr.bf16.gmra.mrb[0].mxu0 %v326
        %v371 = vpop.f32.mrb[0].mxu0
        %v372 = vadd.f32 %v277, %v371
        %v373 = vpop.f32.mrb[0].mxu0
        %v374 = vadd.f32 %v281, %v373
        %v375 = vpop.f32.mrb[0].mxu0
        %v376 = vadd.f32 %v277, %v375
        %v377 = vpop.f32.mrb[0].mxu0
        %v378 = vadd.f32 %v281, %v377
        %379 = vmatprep.mubr.bf16.mxu0 0
        %380 = vmatmul.mubr.bf16.gmra.mrb[0].mxu0 %v329
        %v381 = vpop.f32.mrb[0].mxu0
        %v382 = vadd.f32 %v277, %v381
        %v383 = vpop.f32.mrb[0].mxu0
        %v384 = vadd.f32 %v281, %v383
        %v385 = vpop.f32.mrb[0].mxu0
        %v386 = vadd.f32 %v277, %v385
        %v387 = vpop.f32.mrb[0].mxu0
        %v388 = vadd.f32 %v281, %v387
        %389 = vmatprep.mubr.bf16.mxu0 0
        %390 = vmatmul.mubr.bf16.gmra.mrb[0].mxu0 %v332
        %v391 = vpop.f32.mrb[0].mxu0
        %v392 = vadd.f32 %v277, %v391
        %v393 = vpop.f32.mrb[0].mxu0
        %v394 = vadd.f32 %v281, %v393
        %v395 = vpop.f32.mrb[0].mxu0
        %v396 = vadd.f32 %v277, %v395
        %v397 = vpop.f32.mrb[0].mxu0
        %v398 = vadd.f32 %v281, %v397
        %399 = vmatprep.mubr.bf16.mxu0 0
        %400 = vmatmul.mubr.bf16.gmra.mrb[0].mxu0 %v335
        %v401 = vpop.f32.mrb[0].mxu0
        %v402 = vadd.f32 %v277, %v401
        %v403 = vpop.f32.mrb[0].mxu0
        %v404 = vadd.f32 %v281, %v403
        %v405 = vpop.f32.mrb[0].mxu0
        %v406 = vadd.f32 %v277, %v405
        %v407 = vpop.f32.mrb[0].mxu0
        %v408 = vadd.f32 %v281, %v407
        %409 = vdwg.mxu0
        %v410 = vmax.f32 %v372, 0.0
        %v411 = vmax.f32 %v374, 0.0
        %v412 = vmax.f32 %v376, 0.0
        %v413 = vmax.f32 %v378, 0.0
        %v414 = vmax.f32 %v382, 0.0
        %v415 = vmax.f32 %v384, 0.0
        %v416 = vmax.f32 %v386, 0.0
        %v417 = vmax.f32 %v388, 0.0
        %v418 = vmax.f32 %v392, 0.0
        %v419 = vmax.f32 %v394, 0.0
        %v420 = vmax.f32 %v396, 0.0
        %v421 = vmax.f32 %v398, 0.0
        %v422 = vmax.f32 %v402, 0.0
        %v423 = vmax.f32 %v404, 0.0
        %v424 = vmax.f32 %v406, 0.0
        %v425 = vmax.f32 %v408, 0.0
        %v426 = vld [vmem:[#allocation2] sm:$0x3]
        %v427 = vadd.f32 %v410, %v412
        %v428 = vadd.f32 %v427, %v414
        %v429 = vadd.f32 %v428, %v416
        %v430 = vadd.f32 %v429, %v418
        %v431 = vadd.f32 %v430, %v420
        %v432 = vadd.f32 %v431, %v422
        %v433 = vadd.f32 %v432, %v424
        %v434 = vrot.slane %v433, 4
        %v435 = vadd.f32 %v433, %v434
        %v436 = vrot.slane %v435, 2
        %v437 = vadd.f32 %v435, %v436
        %v438 = vrot.slane %v437, 1
        %v439 = vadd.f32 %v437, %v438
        %v440 = vadd.f32 %v411, %v413
        %v441 = vadd.f32 %v440, %v415
        %v442 = vadd.f32 %v441, %v417
        %v443 = vadd.f32 %v442, %v419
        %v444 = vadd.f32 %v443, %v421
        %v445 = vadd.f32 %v444, %v423
        %v446 = vadd.f32 %v445, %v425
        %v447 = vrot.slane %v446, 4
        %v448 = vadd.f32 %v446, %v447
        %v449 = vrot.slane %v448, 2
        %v450 = vadd.f32 %v448, %v449
        %v451 = vrot.slane %v450, 1
        %v452 = vadd.f32 %v450, %v451
        %v455 = vcombine.low %v439, %v452
        %v457 = vunpack.c.l.s4 1966171168
        %v458 = vunpack.c.0.s8 %v457
        %v459 = vlaneseq
        %v460 = vshrl.u32 %v459, 7
        %v461 = vsub.s32 %v458, %v460
        %v462 = vrot.slane %v455, %v461
        %v464 = vunpack.c.l.s4 1966171168
        %v465 = vunpack.c.0.s8 %v464
        %v466 = vlaneseq
        %v467 = vshrl.u32 %v466, 7
        %v468 = vsub.s32 %v465, %v467
        %v469 = vrot.slane %v462, %v468
        %v471 = vadd.f32 %v426, %v469
        %v472 = vlaneseq
        %vm473 = vcmp.ge.s32.totalorder %v472, 0
        %vm474 = vcmp.lt.s32.totalorder %v472, 256
        %vm475 = vmand %vm473, %vm474
        %476 = vst.msk [vmem:[#allocation2] sm:$0x3] %vm475, %v471
        %p477 = scmp.eq.s32.totalorder %s24, 3
        // Predicated region
        $region45: #{encoder_cnn_forward.1} parent=39 // pred_check
          %p478 = pneg %p477
        $region46: #{encoder_cnn_forward.1} parent=39 // pred_check_branch
          %480 = sbr.rel (%p478) target = $region48
        $region47: #{encoder_cnn_forward.1} parent=39 // pred_region
          %v481 = vld [vmem:[#allocation2] sm:$0x3]
          %v482 = vmul.f32 %v481, 0.00390625
          %v484 = vlaneseq
          %v485 = vshrl.u32 %v484, 7
          %v486 = vsub.s32 0, %v485
          %v487 = vrot.slane %v482, %v486
          %v488 = vlaneseq
          %v489 = vshrl.u32 %v488, 7
          %v490 = vsub.s32 1, %v489
          %v491 = vrot.slane %v482, %v490
          %v494 = vpack.c.bf16 %v487, %v487
          %v495 = vpack.c.bf16 %v491, %v491
          %v496 = vld [vmem:[%s3] sm:$0xf]
          %v497 = vld [vmem:[%s3 + $0x4] sm:$0xf]
          %v498 = vld [vmem:[%s3 + $0x8] sm:$0xf]
          %v499 = vld [vmem:[%s3 + $0xc] sm:$0xf]
          %v500 = vld [vmem:[%s3 + $0x10] sm:$0xf]
          %v501 = vld [vmem:[%s3 + $0x14] sm:$0xf]
          %v502 = vld [vmem:[%s3 + $0x18] sm:$0xf]
          %v503 = vld [vmem:[%s3 + $0x1c] sm:$0xf]
          %v504 = vld [vmem:[%s3 + $0x20] sm:$0xf]
          %v505 = vld [vmem:[%s3 + $0x24] sm:$0xf]
          %v506 = vld [vmem:[%s3 + $0x28] sm:$0xf]
          %v507 = vld [vmem:[%s3 + $0x2c] sm:$0xf]
          %v508 = vld [vmem:[%s3 + $0x30] sm:$0xf]
          %v509 = vld [vmem:[%s3 + $0x34] sm:$0xf]
          %v510 = vld [vmem:[%s3 + $0x38] sm:$0xf]
          %v511 = vld [vmem:[%s3 + $0x3c] sm:$0xf]
          %v512 = vld [vmem:[%s3 + $0x40] sm:$0xf]
          %v513 = vld [vmem:[%s3 + $0x44] sm:$0xf]
          %v514 = vld [vmem:[%s3 + $0x48] sm:$0xf]
          %v515 = vld [vmem:[%s3 + $0x4c] sm:$0xf]
          %v516 = vld [vmem:[%s3 + $0x50] sm:$0xf]
          %v517 = vld [vmem:[%s3 + $0x54] sm:$0xf]
          %v518 = vld [vmem:[%s3 + $0x58] sm:$0xf]
          %v519 = vld [vmem:[%s3 + $0x5c] sm:$0xf]
          %v520 = vld [vmem:[%s3 + $0x60] sm:$0xf]
          %v521 = vld [vmem:[%s3 + $0x64] sm:$0xf]
          %v522 = vld [vmem:[%s3 + $0x68] sm:$0xf]
          %v523 = vld [vmem:[%s3 + $0x6c] sm:$0xf]
          %v524 = vld [vmem:[%s3 + $0x70] sm:$0xf]
          %v525 = vld [vmem:[%s3 + $0x74] sm:$0xf]
          %v526 = vld [vmem:[%s3 + $0x78] sm:$0xf]
          %v527 = vld [vmem:[%s3 + $0x7c] sm:$0xf]
          %v528 = vld [vmem:[%s4] sm:$0x1]
          %v561 = vunpack.c.l.b16 %v496
          %v562 = vunpack.c.l.b16 %v497
          %v563 = vunpack.c.l.b16 %v498
          %v564 = vunpack.c.l.b16 %v499
          %v565 = vunpack.c.l.b16 %v500
          %v566 = vunpack.c.l.b16 %v501
          %v567 = vunpack.c.l.b16 %v502
          %v568 = vunpack.c.l.b16 %v503
          %v569 = vunpack.c.l.b16 %v504
          %v570 = vunpack.c.l.b16 %v505
          %v571 = vunpack.c.l.b16 %v506
          %v572 = vunpack.c.l.b16 %v507
          %v573 = vunpack.c.l.b16 %v508
          %v574 = vunpack.c.l.b16 %v509
          %v575 = vunpack.c.l.b16 %v510
          %v576 = vunpack.c.l.b16 %v511
          %v577 = vunpack.c.l.b16 %v512
          %v578 = vunpack.c.l.b16 %v513
          %v579 = vunpack.c.l.b16 %v514
          %v580 = vunpack.c.l.b16 %v515
          %v581 = vunpack.c.l.b16 %v516
          %v582 = vunpack.c.l.b16 %v517
          %v583 = vunpack.c.l.b16 %v518
          %v584 = vunpack.c.l.b16 %v519
          %v585 = vunpack.c.l.b16 %v520
          %v586 = vunpack.c.l.b16 %v521
          %v587 = vunpack.c.l.b16 %v522
          %v588 = vunpack.c.l.b16 %v523
          %v589 = vunpack.c.l.b16 %v524
          %v590 = vunpack.c.l.b16 %v525
          %v591 = vunpack.c.l.b16 %v526
          %v592 = vunpack.c.l.b16 %v527
          %v593 = vpack.c.b16 %v562, %v561
          %v594 = vpack.c.b16 %v564, %v563
          %v595 = vpack.c.b16 %v566, %v565
          %v596 = vpack.c.b16 %v568, %v567
          %v597 = vpack.c.b16 %v570, %v569
          %v598 = vpack.c.b16 %v572, %v571
          %v599 = vpack.c.b16 %v574, %v573
          %v600 = vpack.c.b16 %v576, %v575
          %v601 = vpack.c.b16 %v578, %v577
          %v602 = vpack.c.b16 %v580, %v579
          %v603 = vpack.c.b16 %v582, %v581
          %v604 = vpack.c.b16 %v584, %v583
          %v605 = vpack.c.b16 %v586, %v585
          %v606 = vpack.c.b16 %v588, %v587
          %v607 = vpack.c.b16 %v590, %v589
          %v608 = vpack.c.b16 %v592, %v591
          %625 = vmatprep.subr.bf16.mxu0 0
          %626 = vmatpush1.bf16.msra.mxu0 %v593
          %627 = vmatprep.subr.bf16.mxu0 0
          %628 = vmatpush1.bf16.msra.mxu0 %v594
          %629 = vmatprep.subr.bf16.mxu0 0
          %630 = vmatpush1.bf16.msra.mxu0 %v595
          %631 = vmatprep.subr.bf16.mxu0 0
          %632 = vmatpush1.bf16.msra.mxu0 %v596
          %633 = vmatprep.subr.bf16.mxu0 0
          %634 = vmatpush1.bf16.msra.mxu0 %v597
          %635 = vmatprep.subr.bf16.mxu0 0
          %636 = vmatpush1.bf16.msra.mxu0 %v598
          %637 = vmatprep.subr.bf16.mxu0 0
          %638 = vmatpush1.bf16.msra.mxu0 %v599
          %639 = vmatprep.subr.bf16.mxu0 0
          %640 = vmatpush1.bf16.msra.mxu0 %v600
          %641 = vmatprep.subr.bf16.mxu0 0
          %642 = vmatpush1.bf16.msra.mxu0 %v601
          %643 = vmatprep.subr.bf16.mxu0 0
          %644 = vmatpush1.bf16.msra.mxu0 %v602
          %645 = vmatprep.subr.bf16.mxu0 0
          %646 = vmatpush1.bf16.msra.mxu0 %v603
          %647 = vmatprep.subr.bf16.mxu0 0
          %648 = vmatpush1.bf16.msra.mxu0 %v604
          %649 = vmatprep.subr.bf16.mxu0 0
          %650 = vmatpush1.bf16.msra.mxu0 %v605
          %651 = vmatprep.subr.bf16.mxu0 0
          %652 = vmatpush1.bf16.msra.mxu0 %v606
          %653 = vmatprep.subr.bf16.mxu0 0
          %654 = vmatpush1.bf16.msra.mxu0 %v607
          %655 = vmatprep.subr.bf16.mxu0 0
          %656 = vmatpush1.bf16.msra.mxu0 %v608
          %657 = vmatprep.mubr.bf16.mxu0 %v495
          %658 = vmatmul.mubr.bf16.gmra.mrb[0].mxu0 %v494
          %v659 = vpop.f32.mrb[0].mxu0
          %v660 = vadd.f32 %v528, %v659
          %v661 = vpop.f32.mrb[0].mxu0
          %v662 = vpop.f32.mrb[0].mxu0
          %v663 = vpop.f32.mrb[0].mxu0
          %664 = vdwg.mxu0
          %665 = vst [vmem:[%s239] sm:$0x1] %v660
        $region48: #{encoder_cnn_forward.1} parent=39 // pred_fallthru
          _
        %s666 = sand.u32 %s151, 1
        %s667 = scalar_lea.sflag [#allocation4], %s666
        %s668 = sand.u32 %s151, 1
        %s669 = scalar_lea.vmem [#allocation3], %s668
        // Predicated region
        $region49: #{encoder_cnn_forward.1} parent=39 // pred_check
          %p670 = pneg %p161
        $region50: #{encoder_cnn_forward.1} parent=39 // pred_check_branch
          %672 = sbr.rel (%p670) target = $region52
        $region51: #{encoder_cnn_forward.1} parent=39 // pred_region
          %s674 = ssub.s32 16, 16
          %675 = vsyncadd %s667, %s674
          %s676 = smul.addr %s23, 16
          %s677 = scalar_lea.hbm %s5, %s676
          %s679 = sshll.u32 %s669, 4
          %s680 = int_to_ptr.vmem [resolvable:$true] %s679
          %682 = dma.vmem_to_hbm [thread:$0]  %s680, 16, %s677, %s667
        $region52: #{encoder_cnn_forward.1} parent=39 // pred_fallthru
          _
      $region40: #{encoder_cnn_forward.1} parent=5 // pred_fallthru
        _
      %p683 = scmp.le.s32.totalorder 2, %s14
      // Predicated region
      $region53: #{encoder_cnn_forward.1} parent=5 // pred_check
        %p684 = pneg %p683
      $region54: #{encoder_cnn_forward.1} parent=5 // pred_check_branch
        %686 = sbr.rel (%p684) target = $region56
      $region55: #{encoder_cnn_forward.1} parent=5 // pred_region
        %s687 = ssub.s32 %s14, 2
        // Predicated region
        $region57: #{encoder_cnn_forward.1} parent=55 // pred_check
          %p688 = pneg %p167
        $region58: #{encoder_cnn_forward.1} parent=55 // pred_check_branch
          %690 = sbr.rel (%p688) target = $region60
        $region59: #{encoder_cnn_forward.1} parent=55 // pred_region
          %s691 = sand.u32 %s152, 1
          %s692 = scalar_lea.sflag [#allocation4], %s691
          %s693 = sand.u32 %s152, 1
          %s694 = scalar_lea.vmem [#allocation3], %s693
          %695 = dma.done %s692, 16
        $region60: #{encoder_cnn_forward.1} parent=55 // pred_fallthru
          _
      $region56: #{encoder_cnn_forward.1} parent=5 // pred_fallthru
        _
    $region6: #{encoder_cnn_forward.1} parent=1 // loop_footer
      %s18 = sadd.s32 1, %s14
    $region7: #{encoder_cnn_forward.1} parent=1 // loop_footer_branch
      %13 = sbr.rel target = $region3
    $region8: #{encoder_cnn_forward.1} parent=1 // loop_exit
      _
    %696 = vsyncpa [#allocation4], 1
    %s697 = scalar_lea.sflag [#allocation4], 1
    %698 = vsyncpa %s697, 1

</llo_original>
